<compile_context>
chip_gen: v5e
topology: v5e:2x2
jax: 0.10.0
libtpu: 0.0.40
codegen_flags: <defaults>
</compile_context>

<pallas_src>
import jax
import jax.numpy as jnp
from jax.experimental import pallas as pl
from jax.experimental.pallas import tpu as pltpu

_LANE = 128  # TPU vreg lane width; pad node & feature dims to multiples of this.


def _round_up(x, m):
    return (x + m - 1) // m * m


# --------------------------------------------------------------------------- #
# Fused 2-layer SAGEConv kernel (single VMEM-resident block).
# --------------------------------------------------------------------------- #
def _graphsage_fused_kernel(a_ref, x_ref,
                            w1l_ref, w1r_ref, b1_ref,
                            w2l_ref, w2r_ref, b2_ref,
                            o_ref):
    """out = SAGEConv2( relu( SAGEConv1(x) ) ), all blocks VMEM-resident.

    a_ref   : (Np, Np)   bf16  row-normalized adjacency (mean aggregation)
    x_ref   : (Np, Fi)   bf16  node features (zero-padded)
    w1l_ref : (Fi, Hd)   bf16  W1_l^T (padded)
    w1r_ref : (Fi, Hd)   bf16  W1_r^T (padded)
    b1_ref  : (1, Hd)    f32
    w2l_ref : (Hd, Fo)   bf16  W2_l^T (padded)
    w2r_ref : (Hd, Fo)   bf16  W2_r^T (padded)
    b2_ref  : (1, Fo)    f32
    o_ref   : (Np, Fo)   f32
    """
    a = a_ref[...]
    x = x_ref[...]

    # ---- layer 1: h = relu( (A@X)@W1_l^T + X@W1_r^T + b1 ) ---------------- #
    agg1 = jnp.dot(a, x, preferred_element_type=jnp.float32)        # (Np, Fi) f32
    agg1 = agg1.astype(jnp.bfloat16)
    h = (jnp.dot(agg1, w1l_ref[...], preferred_element_type=jnp.float32)
         + jnp.dot(x, w1r_ref[...], preferred_element_type=jnp.float32)
         + b1_ref[...])
    h = jnp.maximum(h, 0.0)                                          # (Np, Hd) f32
    h_bf = h.astype(jnp.bfloat16)

    # ---- layer 2: out = (A@H)@W2_l^T + H@W2_r^T + b2 (no activation) ------ #
    agg2 = jnp.dot(a, h_bf, preferred_element_type=jnp.float32)      # (Np, Hd) f32
    agg2 = agg2.astype(jnp.bfloat16)
    out = (jnp.dot(agg2, w2l_ref[...], preferred_element_type=jnp.float32)
           + jnp.dot(h_bf, w2r_ref[...], preferred_element_type=jnp.float32)
           + b2_ref[...])

    o_ref[...] = out.astype(o_ref.dtype)


def _graphsage_pallas(a_norm, x_pad, w1l, w1r, b1, w2l, w2r, b2):
    n_pad = x_pad.shape[0]
    f_out_pad = w2l.shape[1]
    vmem = pl.BlockSpec(memory_space=pltpu.MemorySpace.VMEM)
    return pl.pallas_call(
        _graphsage_fused_kernel,
        out_shape=jax.ShapeDtypeStruct((n_pad, f_out_pad), jnp.float32),
        in_specs=[vmem] * 8,
        out_specs=vmem,
        compiler_params=pltpu.CompilerParams(vmem_limit_bytes=64 << 20),
    )(a_norm, x_pad, w1l, w1r, b1, w2l, w2r, b2)


# --------------------------------------------------------------------------- #
# Plain-JAX glue: dense row-normalized adjacency for mean aggregation.
# --------------------------------------------------------------------------- #
def build_mean_aggregation_matrix(edge_index, num_nodes, num_nodes_padded):
    """A_norm[i, j] = 1/deg(i) if edge j->i exists (PyG flow: source -> target).

    Padded rows/cols beyond `num_nodes` stay zero.  Isolated nodes (deg=0) get a
    zero aggregation vector, matching PyG's scatter-mean behavior.
    """
    src = edge_index[0]
    dst = edge_index[1]
    adj = jnp.zeros((num_nodes_padded, num_nodes_padded), dtype=jnp.float32)
    adj = adj.at[dst, src].add(1.0)
    deg = jnp.sum(adj, axis=1, keepdims=True)
    a_norm = adj / jnp.maximum(deg, 1.0)
    return a_norm.astype(jnp.bfloat16)


# --------------------------------------------------------------------------- #
# Parameters: pre-transposed and pre-padded at init (no per-call reshapes).
# --------------------------------------------------------------------------- #
def init_sage_params(key, in_channels, hidden_channels, out_channels):
    fin_p = _round_up(in_channels, _LANE)
    hid_p = _round_up(hidden_channels, _LANE)
    fout_p = _round_up(out_channels, _LANE)

    def lin(k, fan_out, fan_in):
        bound = 1.0 / jnp.sqrt(jnp.float32(fan_in))
        return jax.random.uniform(k, (fan_out, fan_in), jnp.float32, -bound, bound)

    def pad_t(w, fin, fin_pad, fout, fout_pad):
        # Store W^T zero-padded to a lane-dense (fin_pad, fout_pad) bf16 block.
        wt = jnp.zeros((fin_pad, fout_pad), jnp.float32)
        wt = wt.at[:fin, :fout].set(w.T)
        return wt.astype(jnp.bfloat16)

    def pad_bias(b, fout, fout_pad):
        return jnp.zeros((1, fout_pad), jnp.float32).at[0, :fout].set(b)

    k = jax.random.split(key, 6)
    w1_l = lin(k[0], hidden_channels, in_channels)
    w1_r = lin(k[1], hidden_channels, in_channels)
    b1 = jax.random.uniform(k[2], (hidden_channels,), jnp.float32, -0.1, 0.1)
    w2_l = lin(k[3], out_channels, hidden_channels)
    w2_r = lin(k[4], out_channels, hidden_channels)
    b2 = jax.random.uniform(k[5], (out_channels,), jnp.float32, -0.1, 0.1)

    params = {
        "w1_l_t": pad_t(w1_l, in_channels, fin_p, hidden_channels, hid_p),
        "w1_r_t": pad_t(w1_r, in_channels, fin_p, hidden_channels, hid_p),
        "b1": pad_bias(b1, hidden_channels, hid_p),
        "w2_l_t": pad_t(w2_l, hidden_channels, hid_p, out_channels, fout_p),
        "w2_r_t": pad_t(w2_r, hidden_channels, hid_p, out_channels, fout_p),
        "b2": pad_bias(b2, out_channels, fout_p),
    }
    dims = {
        "in": in_channels, "hidden": hidden_channels, "out": out_channels,
        "in_pad": fin_p, "hidden_pad": hid_p, "out_pad": fout_p,
    }
    return params, dims


# --------------------------------------------------------------------------- #
# Forward pass.
# --------------------------------------------------------------------------- #
def graphsage_forward(params, dims, x, edge_index):
    num_nodes, f_in = x.shape
    assert f_in == dims["in"]
    n_pad = _round_up(num_nodes, _LANE)

    a_norm = build_mean_aggregation_matrix(edge_index, num_nodes, n_pad)

    x_pad = jnp.zeros((n_pad, dims["in_pad"]), jnp.bfloat16)
    x_pad = x_pad.at[:num_nodes, :f_in].set(x.astype(jnp.bfloat16))

    out_pad = _graphsage_pallas(
        a_norm, x_pad,
        params["w1_l_t"], params["w1_r_t"], params["b1"],
        params["w2_l_t"], params["w2_r_t"], params["b2"],
    )
    return out_pad[:num_nodes, :dims["out"]]


if __name__ == "__main__":
    key = jax.random.PRNGKey(0)
    k_x, k_e, k_p = jax.random.split(key, 3)

    num_nodes = 16
    in_channels = 8
    hidden_channels = 32
    out_channels = 16
    num_edges = 40

    # Deterministic node features and random edges (row 0 = src, row 1 = dst).
    x = jax.random.normal(k_x, (num_nodes, in_channels), dtype=jnp.float32)
    edge_index = jax.random.randint(
        k_e, (2, num_edges), 0, num_nodes, dtype=jnp.int32)

    params, dims = init_sage_params(
        k_p, in_channels, hidden_channels, out_channels)

    out = graphsage_forward(params, dims, x, edge_index)
    out = jax.block_until_ready(out)

    assert out.shape == (num_nodes, out_channels)
    assert bool(jnp.all(jnp.isfinite(out)))
    print("KERNEL_OK")
</pallas_src>

<mosaic_0001>
module attributes {stable_mosaic.version = 11 : i64} {
  func.func @_graphsage_fused_kernel(%arg0: memref<128x128xbf16, #tpu.memory_space<vmem>>, %arg1: memref<128x128xbf16, #tpu.memory_space<vmem>>, %arg2: memref<128x128xbf16, #tpu.memory_space<vmem>>, %arg3: memref<128x128xbf16, #tpu.memory_space<vmem>>, %arg4: memref<1x128xf32, #tpu.memory_space<vmem>>, %arg5: memref<128x128xbf16, #tpu.memory_space<vmem>>, %arg6: memref<128x128xbf16, #tpu.memory_space<vmem>>, %arg7: memref<1x128xf32, #tpu.memory_space<vmem>>, %arg8: memref<128x128xf32, #tpu.memory_space<vmem>>) attributes {dimension_semantics = [], scalar_prefetch = 0 : i64, scratch_operands = 0 : i64, tpu.core_type = #tpu.core_type<tc>} {
    %c0 = arith.constant 0 : index
    %c0_0 = arith.constant 0 : index
    %0 = vector.load %arg0[%c0, %c0_0] : memref<128x128xbf16, #tpu.memory_space<vmem>>, vector<128x128xbf16>
    %c0_1 = arith.constant 0 : index
    %c0_2 = arith.constant 0 : index
    %1 = vector.load %arg1[%c0_1, %c0_2] : memref<128x128xbf16, #tpu.memory_space<vmem>>, vector<128x128xbf16>
    %cst = arith.constant dense<0.000000e+00> : vector<128x128xf32>
    %2 = tpu.matmul %0, %1, %cst {dimension_numbers = #tpu.dot_dimension_numbers<[1], [0], [0], [1], [0, 0, 1, 1], [], []>} : vector<128x128xbf16>, vector<128x128xbf16>, vector<128x128xf32> -> vector<128x128xf32>
    %3 = arith.truncf %2 : vector<128x128xf32> to vector<128x128xbf16>
    %c0_3 = arith.constant 0 : index
    %c0_4 = arith.constant 0 : index
    %4 = vector.load %arg2[%c0_3, %c0_4] : memref<128x128xbf16, #tpu.memory_space<vmem>>, vector<128x128xbf16>
    %cst_5 = arith.constant dense<0.000000e+00> : vector<128x128xf32>
    %5 = tpu.matmul %3, %4, %cst_5 {dimension_numbers = #tpu.dot_dimension_numbers<[1], [0], [0], [1], [0, 0, 1, 1], [], []>} : vector<128x128xbf16>, vector<128x128xbf16>, vector<128x128xf32> -> vector<128x128xf32>
    %c0_6 = arith.constant 0 : index
    %c0_7 = arith.constant 0 : index
    %6 = vector.load %arg3[%c0_6, %c0_7] : memref<128x128xbf16, #tpu.memory_space<vmem>>, vector<128x128xbf16>
    %cst_8 = arith.constant dense<0.000000e+00> : vector<128x128xf32>
    %7 = tpu.matmul %1, %6, %cst_8 {dimension_numbers = #tpu.dot_dimension_numbers<[1], [0], [0], [1], [0, 0, 1, 1], [], []>} : vector<128x128xbf16>, vector<128x128xbf16>, vector<128x128xf32> -> vector<128x128xf32>
    %8 = arith.addf %5, %7 : vector<128x128xf32>
    %c0_9 = arith.constant 0 : index
    %c0_10 = arith.constant 0 : index
    %9 = vector.load %arg4[%c0_9, %c0_10] : memref<1x128xf32, #tpu.memory_space<vmem>>, vector<1x128xf32>
    %10 = vector.broadcast %9 : vector<1x128xf32> to vector<128x128xf32>
    %11 = arith.addf %8, %10 : vector<128x128xf32>
    %cst_11 = arith.constant 0.000000e+00 : f32
    %12 = vector.broadcast %cst_11 : f32 to vector<128x128xf32>
    %13 = arith.maximumf %11, %12 : vector<128x128xf32>
    %14 = arith.truncf %13 : vector<128x128xf32> to vector<128x128xbf16>
    %cst_12 = arith.constant dense<0.000000e+00> : vector<128x128xf32>
    %15 = tpu.matmul %0, %14, %cst_12 {dimension_numbers = #tpu.dot_dimension_numbers<[1], [0], [0], [1], [0, 0, 1, 1], [], []>} : vector<128x128xbf16>, vector<128x128xbf16>, vector<128x128xf32> -> vector<128x128xf32>
    %16 = arith.truncf %15 : vector<128x128xf32> to vector<128x128xbf16>
    %c0_13 = arith.constant 0 : index
    %c0_14 = arith.constant 0 : index
    %17 = vector.load %arg5[%c0_13, %c0_14] : memref<128x128xbf16, #tpu.memory_space<vmem>>, vector<128x128xbf16>
    %cst_15 = arith.constant dense<0.000000e+00> : vector<128x128xf32>
    %18 = tpu.matmul %16, %17, %cst_15 {dimension_numbers = #tpu.dot_dimension_numbers<[1], [0], [0], [1], [0, 0, 1, 1], [], []>} : vector<128x128xbf16>, vector<128x128xbf16>, vector<128x128xf32> -> vector<128x128xf32>
    %c0_16 = arith.constant 0 : index
    %c0_17 = arith.constant 0 : index
    %19 = vector.load %arg6[%c0_16, %c0_17] : memref<128x128xbf16, #tpu.memory_space<vmem>>, vector<128x128xbf16>
    %cst_18 = arith.constant dense<0.000000e+00> : vector<128x128xf32>
    %20 = tpu.matmul %14, %19, %cst_18 {dimension_numbers = #tpu.dot_dimension_numbers<[1], [0], [0], [1], [0, 0, 1, 1], [], []>} : vector<128x128xbf16>, vector<128x128xbf16>, vector<128x128xf32> -> vector<128x128xf32>
    %21 = arith.addf %18, %20 : vector<128x128xf32>
    %c0_19 = arith.constant 0 : index
    %c0_20 = arith.constant 0 : index
    %22 = vector.load %arg7[%c0_19, %c0_20] : memref<1x128xf32, #tpu.memory_space<vmem>>, vector<1x128xf32>
    %23 = vector.broadcast %22 : vector<1x128xf32> to vector<128x128xf32>
    %24 = arith.addf %21, %23 : vector<128x128xf32>
    %c0_21 = arith.constant 0 : index
    %c0_22 = arith.constant 0 : index
    %25 = vector.load %arg8[%c0_21, %c0_22] : memref<128x128xf32, #tpu.memory_space<vmem>>, vector<128x128xf32>
    tpu.vector_store %arg8[%c0_21, %c0_22], %24 {strides = array<i32>} : memref<128x128xf32, #tpu.memory_space<vmem>>, vector<128x128xf32>,
    return
  }
}

</mosaic_0001>

<llo_original>
// kernel: tpu_custom_call.1
$region0: #{tpu_custom_call.1}
  #allocation0 [shape = 'u32[]', space=smem, size = 0x4, offset = 0x4, fixed_abs, tag = 'smem constant byte address 0x4 - core index']
  #allocation1 [shape = 'u32[72,128]{1,0:T(1,128)}', space=vmem, size = 0x9000, scoped, tag = 'internal scratch']
  %s0 = inlined_call_operand.hbm [shape: bf16[128,128], index: 0, kind: input, shape index: {}]
  %s1 = inlined_call_operand.hbm [shape: bf16[128,128], index: 1, kind: input, shape index: {}]
  %s2 = inlined_call_operand.hbm [shape: bf16[128,128], index: 2, kind: input, shape index: {}]
  %s3 = inlined_call_operand.hbm [shape: bf16[128,128], index: 3, kind: input, shape index: {}]
  %s4 = inlined_call_operand.vmem [shape: f32[1,128], index: 4, kind: input, shape index: {}]
  %s5 = inlined_call_operand.hbm [shape: bf16[128,128], index: 5, kind: input, shape index: {}]
  %s6 = inlined_call_operand.hbm [shape: bf16[128,128], index: 6, kind: input, shape index: {}]
  %s7 = inlined_call_operand.vmem [shape: f32[1,128], index: 7, kind: input, shape index: {}]
  %s8 = inlined_call_operand.hbm [shape: f32[128,128], index: 8, kind: output, shape index: {}]
  %s9 = sld [smem:[#allocation0]]
  $region66: #{tpu_custom_call.1} parent=0
    _
  %s11 = ssub.s32 1, %s9
  %s12 = scalar_select 0, %s11, %s9
  $region1: #{tpu_custom_call.1} parent=0
    #allocation2 [shape = 'u8[32768]{0}', space=vmem, size = 0x8000, scoped, tag = 'input window, operand 0, single buffered']
    #allocation3 [shape = 's32[1]{0}', space=sflag, size = 0x4, scoped, tag = 'scoped memory for tpu_custom_call.1']
    #allocation4 [shape = 's32[1]{0}', space=sflag, size = 0x4, scoped, tag = 'scoped memory for tpu_custom_call.1']
    #allocation5 [shape = 'u8[32768]{0}', space=vmem, size = 0x8000, scoped, tag = 'input window, operand 1, single buffered']
    #allocation6 [shape = 's32[1]{0}', space=sflag, size = 0x4, scoped, tag = 'scoped memory for tpu_custom_call.1']
    #allocation7 [shape = 'u8[32768]{0}', space=vmem, size = 0x8000, scoped, tag = 'input window, operand 2, single buffered']
    #allocation8 [shape = 'u8[32768]{0}', space=vmem, size = 0x8000, scoped, tag = 'input window, operand 3, single buffered']
    #allocation9 [shape = 's32[1]{0}', space=sflag, size = 0x4, scoped, tag = 'scoped memory for tpu_custom_call.1']
    #allocation10 [shape = 'u8[32768]{0}', space=vmem, size = 0x8000, scoped, tag = 'input window, operand 5, single buffered']
    #allocation11 [shape = 'u8[32768]{0}', space=vmem, size = 0x8000, scoped, tag = 'input window, operand 6, single buffered']
    #allocation12 [shape = 's32[1]{0}', space=sflag, size = 0x4, scoped, tag = 'scoped memory for tpu_custom_call.1']
    #allocation13 [shape = 'u8[65536]{0}', space=vmem, size = 0x10000, scoped, tag = 'output window, operand 0, single buffered']
    %13 = vsyncpa [#allocation3], 0
    %14 = vsyncpa [#allocation6], 0
    %15 = vsyncpa [#allocation9], 0
    %16 = vsyncpa [#allocation12], 0
    %17 = vsyncpa [#allocation4], 0
    // Predicated region
    $region2: #{tpu_custom_call.1} parent=1 // pred_check
      _
    $region3: #{tpu_custom_call.1} parent=1 // pred_check_branch
      %19 = sbr.rel (0) target = $region5
    $region4: #{tpu_custom_call.1} parent=1 // pred_region
      %21 = vsyncadd [#allocation3], 0
      %s22 = sshll.u32 %s0, 4
      %s23 = int_to_ptr.hbm [resolvable:$true] %s22
      %s24 = sshll.u32 [#allocation2], 4
      %s25 = int_to_ptr.vmem [resolvable:$true] %s24
      %30 = dma.hbm_to_vmem [thread:$0]  %s23, 1024, %s25, [#allocation3], 64, 64, 4
    $region5: #{tpu_custom_call.1} parent=1 // pred_fallthru
      _
    // Predicated region
    $region6: #{tpu_custom_call.1} parent=1 // pred_check
      _
    $region7: #{tpu_custom_call.1} parent=1 // pred_check_branch
      %32 = sbr.rel (0) target = $region9
    $region8: #{tpu_custom_call.1} parent=1 // pred_region
      %34 = vsyncadd [#allocation6], 0
      %s35 = sshll.u32 %s1, 4
      %s36 = int_to_ptr.hbm [resolvable:$true] %s35
      %s37 = sshll.u32 [#allocation5], 4
      %s38 = int_to_ptr.vmem [resolvable:$true] %s37
      %43 = dma.hbm_to_vmem [thread:$0]  %s36, 1024, %s38, [#allocation6], 64, 64, 4
    $region9: #{tpu_custom_call.1} parent=1 // pred_fallthru
      _
    // Predicated region
    $region10: #{tpu_custom_call.1} parent=1 // pred_check
      _
    $region11: #{tpu_custom_call.1} parent=1 // pred_check_branch
      %45 = sbr.rel (0) target = $region13
    $region12: #{tpu_custom_call.1} parent=1 // pred_region
      %47 = vsyncadd [#allocation6], 0
      %s48 = sshll.u32 %s2, 4
      %s49 = int_to_ptr.hbm [resolvable:$true] %s48
      %s50 = sshll.u32 [#allocation7], 4
      %s51 = int_to_ptr.vmem [resolvable:$true] %s50
      %56 = dma.hbm_to_vmem [thread:$0]  %s49, 1024, %s51, [#allocation6], 64, 64, 4
    $region13: #{tpu_custom_call.1} parent=1 // pred_fallthru
      _
    // Predicated region
    $region14: #{tpu_custom_call.1} parent=1 // pred_check
      _
    $region15: #{tpu_custom_call.1} parent=1 // pred_check_branch
      %58 = sbr.rel (0) target = $region17
    $region16: #{tpu_custom_call.1} parent=1 // pred_region
      %60 = vsyncadd [#allocation9], 0
      %s61 = sshll.u32 %s3, 4
      %s62 = int_to_ptr.hbm [resolvable:$true] %s61
      %s63 = sshll.u32 [#allocation8], 4
      %s64 = int_to_ptr.vmem [resolvable:$true] %s63
      %69 = dma.hbm_to_vmem [thread:$0]  %s62, 1024, %s64, [#allocation9], 64, 64, 4
    $region17: #{tpu_custom_call.1} parent=1 // pred_fallthru
      _
    // Predicated region
    $region18: #{tpu_custom_call.1} parent=1 // pred_check
      _
    $region19: #{tpu_custom_call.1} parent=1 // pred_check_branch
      %71 = sbr.rel (0) target = $region21
    $region20: #{tpu_custom_call.1} parent=1 // pred_region
      _
    $region21: #{tpu_custom_call.1} parent=1 // pred_fallthru
      _
    // Predicated region
    $region22: #{tpu_custom_call.1} parent=1 // pred_check
      _
    $region23: #{tpu_custom_call.1} parent=1 // pred_check_branch
      %73 = sbr.rel (0) target = $region25
    $region24: #{tpu_custom_call.1} parent=1 // pred_region
      %75 = vsyncadd [#allocation9], 0
      %s76 = sshll.u32 %s5, 4
      %s77 = int_to_ptr.hbm [resolvable:$true] %s76
      %s78 = sshll.u32 [#allocation10], 4
      %s79 = int_to_ptr.vmem [resolvable:$true] %s78
      %84 = dma.hbm_to_vmem [thread:$0]  %s77, 1024, %s79, [#allocation9], 64, 64, 4
    $region25: #{tpu_custom_call.1} parent=1 // pred_fallthru
      _
    // Predicated region
    $region26: #{tpu_custom_call.1} parent=1 // pred_check
      _
    $region27: #{tpu_custom_call.1} parent=1 // pred_check_branch
      %86 = sbr.rel (0) target = $region29
    $region28: #{tpu_custom_call.1} parent=1 // pred_region
      %88 = vsyncadd [#allocation12], 0
      %s89 = sshll.u32 %s6, 4
      %s90 = int_to_ptr.hbm [resolvable:$true] %s89
      %s91 = sshll.u32 [#allocation11], 4
      %s92 = int_to_ptr.vmem [resolvable:$true] %s91
      %97 = dma.hbm_to_vmem [thread:$0]  %s90, 1024, %s92, [#allocation12], 64, 64, 4
    $region29: #{tpu_custom_call.1} parent=1 // pred_fallthru
      _
    // Predicated region
    $region30: #{tpu_custom_call.1} parent=1 // pred_check
      _
    $region31: #{tpu_custom_call.1} parent=1 // pred_check_branch
      %99 = sbr.rel (0) target = $region33
    $region32: #{tpu_custom_call.1} parent=1 // pred_region
      _
    $region33: #{tpu_custom_call.1} parent=1 // pred_fallthru
      _
    // Predicated region
    $region34: #{tpu_custom_call.1} parent=1 // pred_check
      _
    $region35: #{tpu_custom_call.1} parent=1 // pred_check_branch
      %101 = sbr.rel (0) target = $region37
    $region36: #{tpu_custom_call.1} parent=1 // pred_region
      %103 = dma.done [#allocation3], 1024
    $region37: #{tpu_custom_call.1} parent=1 // pred_fallthru
      _
    // Predicated region
    $region38: #{tpu_custom_call.1} parent=1 // pred_check
      _
    $region39: #{tpu_custom_call.1} parent=1 // pred_check_branch
      %105 = sbr.rel (0) target = $region41
    $region40: #{tpu_custom_call.1} parent=1 // pred_region
      %107 = dma.done [#allocation6], 1024
    $region41: #{tpu_custom_call.1} parent=1 // pred_fallthru
      _
    // Predicated region
    $region42: #{tpu_custom_call.1} parent=1 // pred_check
      _
    $region43: #{tpu_custom_call.1} parent=1 // pred_check_branch
      %109 = sbr.rel (0) target = $region45
    $region44: #{tpu_custom_call.1} parent=1 // pred_region
      %111 = dma.done [#allocation6], 1024
    $region45: #{tpu_custom_call.1} parent=1 // pred_fallthru
      _
    // Predicated region
    $region46: #{tpu_custom_call.1} parent=1 // pred_check
      _
    $region47: #{tpu_custom_call.1} parent=1 // pred_check_branch
      %113 = sbr.rel (0) target = $region49
    $region48: #{tpu_custom_call.1} parent=1 // pred_region
      %115 = dma.done [#allocation9], 1024
    $region49: #{tpu_custom_call.1} parent=1 // pred_fallthru
      _
    // Predicated region
    $region50: #{tpu_custom_call.1} parent=1 // pred_check
      _
    $region51: #{tpu_custom_call.1} parent=1 // pred_check_branch
      %117 = sbr.rel (0) target = $region53
    $region52: #{tpu_custom_call.1} parent=1 // pred_region
      %119 = dma.done [#allocation9], 1024
    $region53: #{tpu_custom_call.1} parent=1 // pred_fallthru
      _
    // Predicated region
    $region54: #{tpu_custom_call.1} parent=1 // pred_check
      _
    $region55: #{tpu_custom_call.1} parent=1 // pred_check_branch
      %121 = sbr.rel (0) target = $region57
    $region56: #{tpu_custom_call.1} parent=1 // pred_region
      %123 = dma.done [#allocation12], 1024
    $region57: #{tpu_custom_call.1} parent=1 // pred_fallthru
      _
    %v124 = vld [vmem:[#allocation2] sm:$0xf]
    %v125 = vld [vmem:[#allocation2 + $0x4] sm:$0xf]
    %v126 = vld [vmem:[#allocation2 + $0x8] sm:$0xf]
    %v127 = vld [vmem:[#allocation2 + $0xc] sm:$0xf]
    %v128 = vld [vmem:[#allocation2 + $0x10] sm:$0xf]
    %v129 = vld [vmem:[#allocation2 + $0x14] sm:$0xf]
    %v130 = vld [vmem:[#allocation2 + $0x18] sm:$0xf]
    %v131 = vld [vmem:[#allocation2 + $0x1c] sm:$0xf]
    %v132 = vld [vmem:[#allocation2 + $0x20] sm:$0xf]
    %v133 = vld [vmem:[#allocation2 + $0x24] sm:$0xf]
    %v134 = vld [vmem:[#allocation2 + $0x28] sm:$0xf]
    %v135 = vld [vmem:[#allocation2 + $0x2c] sm:$0xf]
    %v136 = vld [vmem:[#allocation2 + $0x30] sm:$0xf]
    %v137 = vld [vmem:[#allocation2 + $0x34] sm:$0xf]
    %v138 = vld [vmem:[#allocation2 + $0x38] sm:$0xf]
    %v139 = vld [vmem:[#allocation2 + $0x3c] sm:$0xf]
    %v140 = vld [vmem:[#allocation5] sm:$0xf]
    %v141 = vld [vmem:[#allocation5 + $0x4] sm:$0xf]
    %v142 = vld [vmem:[#allocation5 + $0x8] sm:$0xf]
    %v143 = vld [vmem:[#allocation5 + $0xc] sm:$0xf]
    %v144 = vld [vmem:[#allocation5 + $0x10] sm:$0xf]
    %v145 = vld [vmem:[#allocation5 + $0x14] sm:$0xf]
    %v146 = vld [vmem:[#allocation5 + $0x18] sm:$0xf]
    %v147 = vld [vmem:[#allocation5 + $0x1c] sm:$0xf]
    %v148 = vld [vmem:[#allocation5 + $0x20] sm:$0xf]
    %v149 = vld [vmem:[#allocation5 + $0x24] sm:$0xf]
    %v150 = vld [vmem:[#allocation5 + $0x28] sm:$0xf]
    %v151 = vld [vmem:[#allocation5 + $0x2c] sm:$0xf]
    %v152 = vld [vmem:[#allocation5 + $0x30] sm:$0xf]
    %v153 = vld [vmem:[#allocation5 + $0x34] sm:$0xf]
    %v154 = vld [vmem:[#allocation5 + $0x38] sm:$0xf]
    %v155 = vld [vmem:[#allocation5 + $0x3c] sm:$0xf]
    %v172 = vunpack.c.l.b16 %v124
    %v173 = vunpack.c.l.b16 %v125
    %v174 = vunpack.c.l.b16 %v126
    %v175 = vunpack.c.l.b16 %v127
    %v176 = vunpack.c.l.b16 %v128
    %v177 = vunpack.c.l.b16 %v129
    %v178 = vunpack.c.l.b16 %v130
    %v179 = vunpack.c.l.b16 %v131
    %v180 = vunpack.c.l.b16 %v132
    %v181 = vunpack.c.l.b16 %v133
    %v182 = vunpack.c.l.b16 %v134
    %v183 = vunpack.c.l.b16 %v135
    %v184 = vunpack.c.l.b16 %v136
    %v185 = vunpack.c.l.b16 %v137
    %v186 = vunpack.c.l.b16 %v138
    %v187 = vunpack.c.l.b16 %v139
    %v188 = vpack.c.b16 %v173, %v172
    %v189 = vpack.c.b16 %v175, %v174
    %v190 = vpack.c.b16 %v177, %v176
    %v191 = vpack.c.b16 %v179, %v178
    %v192 = vpack.c.b16 %v181, %v180
    %v193 = vpack.c.b16 %v183, %v182
    %v194 = vpack.c.b16 %v185, %v184
    %v195 = vpack.c.b16 %v187, %v186
    %v220 = vunpack.c.l.b16 %v140
    %v221 = vunpack.c.l.b16 %v141
    %v222 = vunpack.c.l.b16 %v142
    %v223 = vunpack.c.l.b16 %v143
    %v224 = vunpack.c.l.b16 %v144
    %v225 = vunpack.c.l.b16 %v145
    %v226 = vunpack.c.l.b16 %v146
    %v227 = vunpack.c.l.b16 %v147
    %v228 = vunpack.c.l.b16 %v148
    %v229 = vunpack.c.l.b16 %v149
    %v230 = vunpack.c.l.b16 %v150
    %v231 = vunpack.c.l.b16 %v151
    %v232 = vunpack.c.l.b16 %v152
    %v233 = vunpack.c.l.b16 %v153
    %v234 = vunpack.c.l.b16 %v154
    %v235 = vunpack.c.l.b16 %v155
    %v236 = vpack.c.b16 %v221, %v220
    %v237 = vpack.c.b16 %v223, %v222
    %v238 = vpack.c.b16 %v225, %v224
    %v239 = vpack.c.b16 %v227, %v226
    %v240 = vpack.c.b16 %v229, %v228
    %v241 = vpack.c.b16 %v231, %v230
    %v242 = vpack.c.b16 %v233, %v232
    %v243 = vpack.c.b16 %v235, %v234
    %252 = vmatpush.bf16.msra.mxu0 %v243
    %253 = vmatpush.bf16.msra.mxu0 %v242
    %254 = vmatpush.bf16.msra.mxu0 %v241
    %255 = vmatpush.bf16.msra.mxu0 %v240
    %256 = vmatpush.bf16.msra.mxu0 %v239
    %257 = vmatpush.bf16.msra.mxu0 %v238
    %258 = vmatpush.bf16.msra.mxu0 %v237
    %259 = vmatpush.bf16.msra.mxu0 %v236
    %260 = vmatmul.bf16.gmra.mxu0 %v188
    %v261 = vpop.f32.mrf.mxu0
    %v262 = vadd.f32 0.0, %v261
    %v263 = vpop.f32.mrf.mxu0
    %v264 = vadd.f32 0.0, %v263
    %265 = vmatmul.bf16.gmra.mxu0 %v189
    %v266 = vpop.f32.mrf.mxu0
    %v267 = vadd.f32 0.0, %v266
    %v268 = vpop.f32.mrf.mxu0
    %v269 = vadd.f32 0.0, %v268
    %270 = vmatmul.bf16.gmra.mxu0 %v190
    %v271 = vpop.f32.mrf.mxu0
    %v272 = vadd.f32 0.0, %v271
    %v273 = vpop.f32.mrf.mxu0
    %v274 = vadd.f32 0.0, %v273
    %275 = vmatmul.bf16.gmra.mxu0 %v191
    %v276 = vpop.f32.mrf.mxu0
    %v277 = vadd.f32 0.0, %v276
    %v278 = vpop.f32.mrf.mxu0
    %v279 = vadd.f32 0.0, %v278
    %280 = vmatmul.bf16.gmra.mxu0 %v192
    %v281 = vpop.f32.mrf.mxu0
    %v282 = vadd.f32 0.0, %v281
    %v283 = vpop.f32.mrf.mxu0
    %v284 = vadd.f32 0.0, %v283
    %285 = vmatmul.bf16.gmra.mxu0 %v193
    %v286 = vpop.f32.mrf.mxu0
    %v287 = vadd.f32 0.0, %v286
    %v288 = vpop.f32.mrf.mxu0
    %v289 = vadd.f32 0.0, %v288
    %290 = vmatmul.bf16.gmra.mxu0 %v194
    %v291 = vpop.f32.mrf.mxu0
    %v292 = vadd.f32 0.0, %v291
    %v293 = vpop.f32.mrf.mxu0
    %v294 = vadd.f32 0.0, %v293
    %295 = vmatmul.bf16.gmra.mxu0 %v195
    %v296 = vpop.f32.mrf.mxu0
    %v297 = vadd.f32 0.0, %v296
    %v298 = vpop.f32.mrf.mxu0
    %v299 = vadd.f32 0.0, %v298
    %300 = vdwg.mxu0
    %v301 = vpack.c.bf16 %v264, %v262
    %v302 = vpack.c.bf16 %v269, %v267
    %v303 = vpack.c.bf16 %v274, %v272
    %v304 = vpack.c.bf16 %v279, %v277
    %v305 = vpack.c.bf16 %v284, %v282
    %v306 = vpack.c.bf16 %v289, %v287
    %v307 = vpack.c.bf16 %v294, %v292
    %v308 = vpack.c.bf16 %v299, %v297
    %v309 = vld [vmem:[#allocation7] sm:$0xf]
    %v310 = vld [vmem:[#allocation7 + $0x4] sm:$0xf]
    %v311 = vld [vmem:[#allocation7 + $0x8] sm:$0xf]
    %v312 = vld [vmem:[#allocation7 + $0xc] sm:$0xf]
    %v313 = vld [vmem:[#allocation7 + $0x10] sm:$0xf]
    %v314 = vld [vmem:[#allocation7 + $0x14] sm:$0xf]
    %v315 = vld [vmem:[#allocation7 + $0x18] sm:$0xf]
    %v316 = vld [vmem:[#allocation7 + $0x1c] sm:$0xf]
    %v317 = vld [vmem:[#allocation7 + $0x20] sm:$0xf]
    %v318 = vld [vmem:[#allocation7 + $0x24] sm:$0xf]
    %v319 = vld [vmem:[#allocation7 + $0x28] sm:$0xf]
    %v320 = vld [vmem:[#allocation7 + $0x2c] sm:$0xf]
    %v321 = vld [vmem:[#allocation7 + $0x30] sm:$0xf]
    %v322 = vld [vmem:[#allocation7 + $0x34] sm:$0xf]
    %v323 = vld [vmem:[#allocation7 + $0x38] sm:$0xf]
    %v324 = vld [vmem:[#allocation7 + $0x3c] sm:$0xf]
    %v325 = vld [vmem:[#allocation8] sm:$0xf]
    %v326 = vld [vmem:[#allocation8 + $0x4] sm:$0xf]
    %v327 = vld [vmem:[#allocation8 + $0x8] sm:$0xf]
    %v328 = vld [vmem:[#allocation8 + $0xc] sm:$0xf]
    %v329 = vld [vmem:[#allocation8 + $0x10] sm:$0xf]
    %v330 = vld [vmem:[#allocation8 + $0x14] sm:$0xf]
    %v331 = vld [vmem:[#allocation8 + $0x18] sm:$0xf]
    %v332 = vld [vmem:[#allocation8 + $0x1c] sm:$0xf]
    %v333 = vld [vmem:[#allocation8 + $0x20] sm:$0xf]
    %v334 = vld [vmem:[#allocation8 + $0x24] sm:$0xf]
    %v335 = vld [vmem:[#allocation8 + $0x28] sm:$0xf]
    %v336 = vld [vmem:[#allocation8 + $0x2c] sm:$0xf]
    %v337 = vld [vmem:[#allocation8 + $0x30] sm:$0xf]
    %v338 = vld [vmem:[#allocation8 + $0x34] sm:$0xf]
    %v339 = vld [vmem:[#allocation8 + $0x38] sm:$0xf]
    %v340 = vld [vmem:[#allocation8 + $0x3c] sm:$0xf]
    %v357 = vunpack.c.l.b16 %v325
    %v358 = vunpack.c.l.b16 %v326
    %v359 = vunpack.c.l.b16 %v327
    %v360 = vunpack.c.l.b16 %v328
    %v361 = vunpack.c.l.b16 %v329
    %v362 = vunpack.c.l.b16 %v330
    %v363 = vunpack.c.l.b16 %v331
    %v364 = vunpack.c.l.b16 %v332
    %v365 = vunpack.c.l.b16 %v333
    %v366 = vunpack.c.l.b16 %v334
    %v367 = vunpack.c.l.b16 %v335
    %v368 = vunpack.c.l.b16 %v336
    %v369 = vunpack.c.l.b16 %v337
    %v370 = vunpack.c.l.b16 %v338
    %v371 = vunpack.c.l.b16 %v339
    %v372 = vunpack.c.l.b16 %v340
    %v373 = vpack.c.b16 %v358, %v357
    %v374 = vpack.c.b16 %v360, %v359
    %v375 = vpack.c.b16 %v362, %v361
    %v376 = vpack.c.b16 %v364, %v363
    %v377 = vpack.c.b16 %v366, %v365
    %v378 = vpack.c.b16 %v368, %v367
    %v379 = vpack.c.b16 %v370, %v369
    %v380 = vpack.c.b16 %v372, %v371
    %389 = vmatpush.bf16.msra.mxu0 %v380
    %390 = vmatpush.bf16.msra.mxu0 %v379
    %391 = vmatpush.bf16.msra.mxu0 %v378
    %392 = vmatpush.bf16.msra.mxu0 %v377
    %393 = vmatpush.bf16.msra.mxu0 %v376
    %394 = vmatpush.bf16.msra.mxu0 %v375
    %395 = vmatpush.bf16.msra.mxu0 %v374
    %396 = vmatpush.bf16.msra.mxu0 %v373
    %397 = vmatmul.bf16.gmra.mxu0 %v236
    %v398 = vpop.f32.mrf.mxu0
    %v399 = vadd.f32 0.0, %v398
    %v400 = vpop.f32.mrf.mxu0
    %v401 = vadd.f32 0.0, %v400
    %402 = vmatmul.bf16.gmra.mxu0 %v237
    %v403 = vpop.f32.mrf.mxu0
    %v404 = vadd.f32 0.0, %v403
    %v405 = vpop.f32.mrf.mxu0
    %v406 = vadd.f32 0.0, %v405
    %407 = vmatmul.bf16.gmra.mxu0 %v238
    %v408 = vpop.f32.mrf.mxu0
    %v409 = vadd.f32 0.0, %v408
    %v410 = vpop.f32.mrf.mxu0
    %v411 = vadd.f32 0.0, %v410
    %412 = vmatmul.bf16.gmra.mxu0 %v239
    %v413 = vpop.f32.mrf.mxu0
    %v414 = vadd.f32 0.0, %v413
    %v415 = vpop.f32.mrf.mxu0
    %v416 = vadd.f32 0.0, %v415
    %417 = vmatmul.bf16.gmra.mxu0 %v240
    %v418 = vpop.f32.mrf.mxu0
    %v419 = vadd.f32 0.0, %v418
    %v420 = vpop.f32.mrf.mxu0
    %v421 = vadd.f32 0.0, %v420
    %422 = vmatmul.bf16.gmra.mxu0 %v241
    %v423 = vpop.f32.mrf.mxu0
    %v424 = vadd.f32 0.0, %v423
    %v425 = vpop.f32.mrf.mxu0
    %v426 = vadd.f32 0.0, %v425
    %427 = vmatmul.bf16.gmra.mxu0 %v242
    %v428 = vpop.f32.mrf.mxu0
    %v429 = vadd.f32 0.0, %v428
    %v430 = vpop.f32.mrf.mxu0
    %v431 = vadd.f32 0.0, %v430
    %432 = vmatmul.bf16.gmra.mxu0 %v243
    %v433 = vpop.f32.mrf.mxu0
    %v434 = vadd.f32 0.0, %v433
    %v435 = vpop.f32.mrf.mxu0
    %v436 = vadd.f32 0.0, %v435
    %437 = vdwg.mxu0
    %v454 = vunpack.c.l.b16 %v309
    %v455 = vunpack.c.l.b16 %v310
    %v456 = vunpack.c.l.b16 %v311
    %v457 = vunpack.c.l.b16 %v312
    %v458 = vunpack.c.l.b16 %v313
    %v459 = vunpack.c.l.b16 %v314
    %v460 = vunpack.c.l.b16 %v315
    %v461 = vunpack.c.l.b16 %v316
    %v462 = vunpack.c.l.b16 %v317
    %v463 = vunpack.c.l.b16 %v318
    %v464 = vunpack.c.l.b16 %v319
    %v465 = vunpack.c.l.b16 %v320
    %v466 = vunpack.c.l.b16 %v321
    %v467 = vunpack.c.l.b16 %v322
    %v468 = vunpack.c.l.b16 %v323
    %v469 = vunpack.c.l.b16 %v324
    %v470 = vpack.c.b16 %v455, %v454
    %v471 = vpack.c.b16 %v457, %v456
    %v472 = vpack.c.b16 %v459, %v458
    %v473 = vpack.c.b16 %v461, %v460
    %v474 = vpack.c.b16 %v463, %v462
    %v475 = vpack.c.b16 %v465, %v464
    %v476 = vpack.c.b16 %v467, %v466
    %v477 = vpack.c.b16 %v469, %v468
    %486 = vmatpush.bf16.msra.mxu0 %v477
    %487 = vmatpush.bf16.msra.mxu0 %v476
    %488 = vmatpush.bf16.msra.mxu0 %v475
    %489 = vmatpush.bf16.msra.mxu0 %v474
    %490 = vmatpush.bf16.msra.mxu0 %v473
    %491 = vmatpush.bf16.msra.mxu0 %v472
    %492 = vmatpush.bf16.msra.mxu0 %v471
    %493 = vmatpush.bf16.msra.mxu0 %v470
    %494 = vmatmul.bf16.gmra.mxu0 %v301
    %v495 = vpop.f32.mrf.mxu0
    %v496 = vadd.f32 %v399, %v495
    %v497 = vpop.f32.mrf.mxu0
    %v498 = vadd.f32 %v401, %v497
    %499 = vmatmul.bf16.gmra.mxu0 %v302
    %v500 = vpop.f32.mrf.mxu0
    %v501 = vadd.f32 %v404, %v500
    %v502 = vpop.f32.mrf.mxu0
    %v503 = vadd.f32 %v406, %v502
    %504 = vmatmul.bf16.gmra.mxu0 %v303
    %v505 = vpop.f32.mrf.mxu0
    %v506 = vadd.f32 %v409, %v505
    %v507 = vpop.f32.mrf.mxu0
    %v508 = vadd.f32 %v411, %v507
    %509 = vmatmul.bf16.gmra.mxu0 %v304
    %v510 = vpop.f32.mrf.mxu0
    %v511 = vadd.f32 %v414, %v510
    %v512 = vpop.f32.mrf.mxu0
    %v513 = vadd.f32 %v416, %v512
    %514 = vmatmul.bf16.gmra.mxu0 %v305
    %v515 = vpop.f32.mrf.mxu0
    %v516 = vadd.f32 %v419, %v515
    %v517 = vpop.f32.mrf.mxu0
    %v518 = vadd.f32 %v421, %v517
    %519 = vmatmul.bf16.gmra.mxu0 %v306
    %v520 = vpop.f32.mrf.mxu0
    %v521 = vadd.f32 %v424, %v520
    %v522 = vpop.f32.mrf.mxu0
    %v523 = vadd.f32 %v426, %v522
    %524 = vmatmul.bf16.gmra.mxu0 %v307
    %v525 = vpop.f32.mrf.mxu0
    %v526 = vadd.f32 %v429, %v525
    %v527 = vpop.f32.mrf.mxu0
    %v528 = vadd.f32 %v431, %v527
    %529 = vmatmul.bf16.gmra.mxu0 %v308
    %v530 = vpop.f32.mrf.mxu0
    %v531 = vadd.f32 %v434, %v530
    %v532 = vpop.f32.mrf.mxu0
    %v533 = vadd.f32 %v436, %v532
    %534 = vdwg.mxu0
    %v535 = vld [vmem:[%s4] sm:$0x1]
    %v537 = vperm.slane %v535, 0
    %v539 = vadd.f32 %v496, %v537
    %v540 = vadd.f32 %v498, %v537
    %v541 = vadd.f32 %v501, %v537
    %v542 = vadd.f32 %v503, %v537
    %v543 = vadd.f32 %v506, %v537
    %v544 = vadd.f32 %v508, %v537
    %v545 = vadd.f32 %v511, %v537
    %v546 = vadd.f32 %v513, %v537
    %v547 = vadd.f32 %v516, %v537
    %v548 = vadd.f32 %v518, %v537
    %v549 = vadd.f32 %v521, %v537
    %v550 = vadd.f32 %v523, %v537
    %v551 = vadd.f32 %v526, %v537
    %v552 = vadd.f32 %v528, %v537
    %v553 = vadd.f32 %v531, %v537
    %v554 = vadd.f32 %v533, %v537
    %v555 = vmax.f32 %v539, 0.0
    %v556 = vmax.f32 %v540, 0.0
    %v557 = vmax.f32 %v541, 0.0
    %v558 = vmax.f32 %v542, 0.0
    %v559 = vmax.f32 %v543, 0.0
    %v560 = vmax.f32 %v544, 0.0
    %v561 = vmax.f32 %v545, 0.0
    %v562 = vmax.f32 %v546, 0.0
    %v563 = vmax.f32 %v547, 0.0
    %v564 = vmax.f32 %v548, 0.0
    %v565 = vmax.f32 %v549, 0.0
    %v566 = vmax.f32 %v550, 0.0
    %v567 = vmax.f32 %v551, 0.0
    %v568 = vmax.f32 %v552, 0.0
    %v569 = vmax.f32 %v553, 0.0
    %v570 = vmax.f32 %v554, 0.0
    %v571 = vpack.c.bf16 %v556, %v555
    %v572 = vpack.c.bf16 %v558, %v557
    %v573 = vpack.c.bf16 %v560, %v559
    %v574 = vpack.c.bf16 %v562, %v561
    %v575 = vpack.c.bf16 %v564, %v563
    %v576 = vpack.c.bf16 %v566, %v565
    %v577 = vpack.c.bf16 %v568, %v567
    %v578 = vpack.c.bf16 %v570, %v569
    %579 = vmatpush.bf16.msra.mxu0 %v578
    %580 = vmatpush.bf16.msra.mxu0 %v577
    %581 = vmatpush.bf16.msra.mxu0 %v576
    %582 = vmatpush.bf16.msra.mxu0 %v575
    %583 = vmatpush.bf16.msra.mxu0 %v574
    %584 = vmatpush.bf16.msra.mxu0 %v573
    %585 = vmatpush.bf16.msra.mxu0 %v572
    %586 = vmatpush.bf16.msra.mxu0 %v571
    %587 = vmatmul.bf16.gmra.mxu0 %v188
    %v588 = vpop.f32.mrf.mxu0
    %v589 = vadd.f32 0.0, %v588
    %v590 = vpop.f32.mrf.mxu0
    %v591 = vadd.f32 0.0, %v590
    %592 = vmatmul.bf16.gmra.mxu0 %v189
    %v593 = vpop.f32.mrf.mxu0
    %v594 = vadd.f32 0.0, %v593
    %v595 = vpop.f32.mrf.mxu0
    %v596 = vadd.f32 0.0, %v595
    %597 = vmatmul.bf16.gmra.mxu0 %v190
    %v598 = vpop.f32.mrf.mxu0
    %v599 = vadd.f32 0.0, %v598
    %v600 = vpop.f32.mrf.mxu0
    %v601 = vadd.f32 0.0, %v600
    %602 = vmatmul.bf16.gmra.mxu0 %v191
    %v603 = vpop.f32.mrf.mxu0
    %v604 = vadd.f32 0.0, %v603
    %v605 = vpop.f32.mrf.mxu0
    %v606 = vadd.f32 0.0, %v605
    %607 = vmatmul.bf16.gmra.mxu0 %v192
    %v608 = vpop.f32.mrf.mxu0
    %v609 = vadd.f32 0.0, %v608
    %v610 = vpop.f32.mrf.mxu0
    %v611 = vadd.f32 0.0, %v610
    %612 = vmatmul.bf16.gmra.mxu0 %v193
    %v613 = vpop.f32.mrf.mxu0
    %v614 = vadd.f32 0.0, %v613
    %v615 = vpop.f32.mrf.mxu0
    %v616 = vadd.f32 0.0, %v615
    %617 = vmatmul.bf16.gmra.mxu0 %v194
    %v618 = vpop.f32.mrf.mxu0
    %v619 = vadd.f32 0.0, %v618
    %v620 = vpop.f32.mrf.mxu0
    %v621 = vadd.f32 0.0, %v620
    %622 = vmatmul.bf16.gmra.mxu0 %v195
    %v623 = vpop.f32.mrf.mxu0
    %v624 = vadd.f32 0.0, %v623
    %v625 = vpop.f32.mrf.mxu0
    %v626 = vadd.f32 0.0, %v625
    %627 = vdwg.mxu0
    %v628 = vpack.c.bf16 %v591, %v589
    %v629 = vpack.c.bf16 %v596, %v594
    %v630 = vpack.c.bf16 %v601, %v599
    %v631 = vpack.c.bf16 %v606, %v604
    %v632 = vpack.c.bf16 %v611, %v609
    %v633 = vpack.c.bf16 %v616, %v614
    %v634 = vpack.c.bf16 %v621, %v619
    %v635 = vpack.c.bf16 %v626, %v624
    %v636 = vld [vmem:[#allocation10] sm:$0xf]
    %v637 = vld [vmem:[#allocation10 + $0x4] sm:$0xf]
    %v638 = vld [vmem:[#allocation10 + $0x8] sm:$0xf]
    %v639 = vld [vmem:[#allocation10 + $0xc] sm:$0xf]
    %v640 = vld [vmem:[#allocation10 + $0x10] sm:$0xf]
    %v641 = vld [vmem:[#allocation10 + $0x14] sm:$0xf]
    %v642 = vld [vmem:[#allocation10 + $0x18] sm:$0xf]
    %v643 = vld [vmem:[#allocation10 + $0x1c] sm:$0xf]
    %v644 = vld [vmem:[#allocation10 + $0x20] sm:$0xf]
    %v645 = vld [vmem:[#allocation10 + $0x24] sm:$0xf]
    %v646 = vld [vmem:[#allocation10 + $0x28] sm:$0xf]
    %v647 = vld [vmem:[#allocation10 + $0x2c] sm:$0xf]
    %v648 = vld [vmem:[#allocation10 + $0x30] sm:$0xf]
    %v649 = vld [vmem:[#allocation10 + $0x34] sm:$0xf]
    %v650 = vld [vmem:[#allocation10 + $0x38] sm:$0xf]
    %v651 = vld [vmem:[#allocation10 + $0x3c] sm:$0xf]
    %v652 = vld [vmem:[#allocation11] sm:$0xf]
    %v653 = vld [vmem:[#allocation11 + $0x4] sm:$0xf]
    %v654 = vld [vmem:[#allocation11 + $0x8] sm:$0xf]
    %v655 = vld [vmem:[#allocation11 + $0xc] sm:$0xf]
    %v656 = vld [vmem:[#allocation11 + $0x10] sm:$0xf]
    %v657 = vld [vmem:[#allocation11 + $0x14] sm:$0xf]
    %v658 = vld [vmem:[#allocation11 + $0x18] sm:$0xf]
    %v659 = vld [vmem:[#allocation11 + $0x1c] sm:$0xf]
    %v660 = vld [vmem:[#allocation11 + $0x20] sm:$0xf]
    %v661 = vld [vmem:[#allocation11 + $0x24] sm:$0xf]
    %v662 = vld [vmem:[#allocation11 + $0x28] sm:$0xf]
    %v663 = vld [vmem:[#allocation11 + $0x2c] sm:$0xf]
    %v664 = vld [vmem:[#allocation11 + $0x30] sm:$0xf]
    %v665 = vld [vmem:[#allocation11 + $0x34] sm:$0xf]
    %v666 = vld [vmem:[#allocation11 + $0x38] sm:$0xf]
    %v667 = vld [vmem:[#allocation11 + $0x3c] sm:$0xf]
    %v684 = vunpack.c.l.b16 %v652
    %v685 = vunpack.c.l.b16 %v653
    %v686 = vunpack.c.l.b16 %v654
    %v687 = vunpack.c.l.b16 %v655
    %v688 = vunpack.c.l.b16 %v656
    %v689 = vunpack.c.l.b16 %v657
    %v690 = vunpack.c.l.b16 %v658
    %v691 = vunpack.c.l.b16 %v659
    %v692 = vunpack.c.l.b16 %v660
    %v693 = vunpack.c.l.b16 %v661
    %v694 = vunpack.c.l.b16 %v662
    %v695 = vunpack.c.l.b16 %v663
    %v696 = vunpack.c.l.b16 %v664
    %v697 = vunpack.c.l.b16 %v665
    %v698 = vunpack.c.l.b16 %v666
    %v699 = vunpack.c.l.b16 %v667
    %v700 = vpack.c.b16 %v685, %v684
    %v701 = vpack.c.b16 %v687, %v686
    %v702 = vpack.c.b16 %v689, %v688
    %v703 = vpack.c.b16 %v691, %v690
    %v704 = vpack.c.b16 %v693, %v692
    %v705 = vpack.c.b16 %v695, %v694
    %v706 = vpack.c.b16 %v697, %v696
    %v707 = vpack.c.b16 %v699, %v698
    %716 = vmatpush.bf16.msra.mxu0 %v707
    %717 = vmatpush.bf16.msra.mxu0 %v706
    %718 = vmatpush.bf16.msra.mxu0 %v705
    %719 = vmatpush.bf16.msra.mxu0 %v704
    %720 = vmatpush.bf16.msra.mxu0 %v703
    %721 = vmatpush.bf16.msra.mxu0 %v702
    %722 = vmatpush.bf16.msra.mxu0 %v701
    %723 = vmatpush.bf16.msra.mxu0 %v700
    %724 = vmatmul.bf16.gmra.mxu0 %v571
    %v725 = vpop.f32.mrf.mxu0
    %v726 = vadd.f32 0.0, %v725
    %v727 = vpop.f32.mrf.mxu0
    %v728 = vadd.f32 0.0, %v727
    %729 = vmatmul.bf16.gmra.mxu0 %v572
    %v730 = vpop.f32.mrf.mxu0
    %v731 = vadd.f32 0.0, %v730
    %v732 = vpop.f32.mrf.mxu0
    %v733 = vadd.f32 0.0, %v732
    %734 = vmatmul.bf16.gmra.mxu0 %v573
    %v735 = vpop.f32.mrf.mxu0
    %v736 = vadd.f32 0.0, %v735
    %v737 = vpop.f32.mrf.mxu0
    %v738 = vadd.f32 0.0, %v737
    %739 = vmatmul.bf16.gmra.mxu0 %v574
    %v740 = vpop.f32.mrf.mxu0
    %v741 = vadd.f32 0.0, %v740
    %v742 = vpop.f32.mrf.mxu0
    %v743 = vadd.f32 0.0, %v742
    %744 = vmatmul.bf16.gmra.mxu0 %v575
    %v745 = vpop.f32.mrf.mxu0
    %v746 = vadd.f32 0.0, %v745
    %v747 = vpop.f32.mrf.mxu0
    %v748 = vadd.f32 0.0, %v747
    %749 = vmatmul.bf16.gmra.mxu0 %v576
    %v750 = vpop.f32.mrf.mxu0
    %v751 = vadd.f32 0.0, %v750
    %v752 = vpop.f32.mrf.mxu0
    %v753 = vadd.f32 0.0, %v752
    %754 = vmatmul.bf16.gmra.mxu0 %v577
    %v755 = vpop.f32.mrf.mxu0
    %v756 = vadd.f32 0.0, %v755
    %v757 = vpop.f32.mrf.mxu0
    %v758 = vadd.f32 0.0, %v757
    %759 = vmatmul.bf16.gmra.mxu0 %v578
    %v760 = vpop.f32.mrf.mxu0
    %v761 = vadd.f32 0.0, %v760
    %v762 = vpop.f32.mrf.mxu0
    %v763 = vadd.f32 0.0, %v762
    %764 = vdwg.mxu0
    %v781 = vunpack.c.l.b16 %v636
    %v782 = vunpack.c.l.b16 %v637
    %v783 = vunpack.c.l.b16 %v638
    %v784 = vunpack.c.l.b16 %v639
    %v785 = vunpack.c.l.b16 %v640
    %v786 = vunpack.c.l.b16 %v641
    %v787 = vunpack.c.l.b16 %v642
    %v788 = vunpack.c.l.b16 %v643
    %v789 = vunpack.c.l.b16 %v644
    %v790 = vunpack.c.l.b16 %v645
    %v791 = vunpack.c.l.b16 %v646
    %v792 = vunpack.c.l.b16 %v647
    %v793 = vunpack.c.l.b16 %v648
    %v794 = vunpack.c.l.b16 %v649
    %v795 = vunpack.c.l.b16 %v650
    %v796 = vunpack.c.l.b16 %v651
    %v797 = vpack.c.b16 %v782, %v781
    %v798 = vpack.c.b16 %v784, %v783
    %v799 = vpack.c.b16 %v786, %v785
    %v800 = vpack.c.b16 %v788, %v787
    %v801 = vpack.c.b16 %v790, %v789
    %v802 = vpack.c.b16 %v792, %v791
    %v803 = vpack.c.b16 %v794, %v793
    %v804 = vpack.c.b16 %v796, %v795
    %813 = vmatpush.bf16.msra.mxu0 %v804
    %814 = vmatpush.bf16.msra.mxu0 %v803
    %815 = vmatpush.bf16.msra.mxu0 %v802
    %816 = vmatpush.bf16.msra.mxu0 %v801
    %817 = vmatpush.bf16.msra.mxu0 %v800
    %818 = vmatpush.bf16.msra.mxu0 %v799
    %819 = vmatpush.bf16.msra.mxu0 %v798
    %820 = vmatpush.bf16.msra.mxu0 %v797
    %821 = vmatmul.bf16.gmra.mxu0 %v628
    %v822 = vpop.f32.mrf.mxu0
    %v823 = vadd.f32 %v726, %v822
    %v824 = vpop.f32.mrf.mxu0
    %v825 = vadd.f32 %v728, %v824
    %826 = vmatmul.bf16.gmra.mxu0 %v629
    %v827 = vpop.f32.mrf.mxu0
    %v828 = vadd.f32 %v731, %v827
    %v829 = vpop.f32.mrf.mxu0
    %v830 = vadd.f32 %v733, %v829
    %831 = vmatmul.bf16.gmra.mxu0 %v630
    %v832 = vpop.f32.mrf.mxu0
    %v833 = vadd.f32 %v736, %v832
    %v834 = vpop.f32.mrf.mxu0
    %v835 = vadd.f32 %v738, %v834
    %836 = vmatmul.bf16.gmra.mxu0 %v631
    %v837 = vpop.f32.mrf.mxu0
    %v838 = vadd.f32 %v741, %v837
    %v839 = vpop.f32.mrf.mxu0
    %v840 = vadd.f32 %v743, %v839
    %841 = vmatmul.bf16.gmra.mxu0 %v632
    %v842 = vpop.f32.mrf.mxu0
    %v843 = vadd.f32 %v746, %v842
    %v844 = vpop.f32.mrf.mxu0
    %v845 = vadd.f32 %v748, %v844
    %846 = vmatmul.bf16.gmra.mxu0 %v633
    %v847 = vpop.f32.mrf.mxu0
    %v848 = vadd.f32 %v751, %v847
    %v849 = vpop.f32.mrf.mxu0
    %v850 = vadd.f32 %v753, %v849
    %851 = vmatmul.bf16.gmra.mxu0 %v634
    %v852 = vpop.f32.mrf.mxu0
    %v853 = vadd.f32 %v756, %v852
    %v854 = vpop.f32.mrf.mxu0
    %v855 = vadd.f32 %v758, %v854
    %856 = vmatmul.bf16.gmra.mxu0 %v635
    %v857 = vpop.f32.mrf.mxu0
    %v858 = vadd.f32 %v761, %v857
    %v859 = vpop.f32.mrf.mxu0
    %v860 = vadd.f32 %v763, %v859
    %861 = vdwg.mxu0
    %v862 = vld [vmem:[%s7] sm:$0x1]
    %v864 = vperm.slane %v862, 0
    %v866 = vadd.f32 %v823, %v864
    %v867 = vadd.f32 %v825, %v864
    %v868 = vadd.f32 %v828, %v864
    %v869 = vadd.f32 %v830, %v864
    %v870 = vadd.f32 %v833, %v864
    %v871 = vadd.f32 %v835, %v864
    %v872 = vadd.f32 %v838, %v864
    %v873 = vadd.f32 %v840, %v864
    %v874 = vadd.f32 %v843, %v864
    %v875 = vadd.f32 %v845, %v864
    %v876 = vadd.f32 %v848, %v864
    %v877 = vadd.f32 %v850, %v864
    %v878 = vadd.f32 %v853, %v864
    %v879 = vadd.f32 %v855, %v864
    %v880 = vadd.f32 %v858, %v864
    %v881 = vadd.f32 %v860, %v864
    %882 = vst [vmem:[#allocation13] sm:$0xff] %v866
    %883 = vst [vmem:[#allocation13 + $0x8] sm:$0xff] %v867
    %884 = vst [vmem:[#allocation13 + $0x10] sm:$0xff] %v868
    %885 = vst [vmem:[#allocation13 + $0x18] sm:$0xff] %v869
    %886 = vst [vmem:[#allocation13 + $0x20] sm:$0xff] %v870
    %887 = vst [vmem:[#allocation13 + $0x28] sm:$0xff] %v871
    %888 = vst [vmem:[#allocation13 + $0x30] sm:$0xff] %v872
    %889 = vst [vmem:[#allocation13 + $0x38] sm:$0xff] %v873
    %890 = vst [vmem:[#allocation13 + $0x40] sm:$0xff] %v874
    %891 = vst [vmem:[#allocation13 + $0x48] sm:$0xff] %v875
    %892 = vst [vmem:[#allocation13 + $0x50] sm:$0xff] %v876
    %893 = vst [vmem:[#allocation13 + $0x58] sm:$0xff] %v877
    %894 = vst [vmem:[#allocation13 + $0x60] sm:$0xff] %v878
    %895 = vst [vmem:[#allocation13 + $0x68] sm:$0xff] %v879
    %896 = vst [vmem:[#allocation13 + $0x70] sm:$0xff] %v880
    %897 = vst [vmem:[#allocation13 + $0x78] sm:$0xff] %v881
    // Predicated region
    $region58: #{tpu_custom_call.1} parent=1 // pred_check
      _
    $region59: #{tpu_custom_call.1} parent=1 // pred_check_branch
      %899 = sbr.rel (0) target = $region61
    $region60: #{tpu_custom_call.1} parent=1 // pred_region
      %901 = vsyncadd [#allocation4], 0
      %s902 = sshll.u32 [#allocation13], 4
      %s903 = int_to_ptr.vmem [resolvable:$true] %s902
      %s904 = sshll.u32 %s8, 4
      %s905 = int_to_ptr.hbm [resolvable:$true] %s904
      %910 = dma.vmem_to_hbm [thread:$0]  %s903, 2048, %s905, [#allocation4], 128, 128, 8
    $region61: #{tpu_custom_call.1} parent=1 // pred_fallthru
      _
    // Predicated region
    $region62: #{tpu_custom_call.1} parent=1 // pred_check
      _
    $region63: #{tpu_custom_call.1} parent=1 // pred_check_branch
      %912 = sbr.rel (0) target = $region65
    $region64: #{tpu_custom_call.1} parent=1 // pred_region
      %914 = dma.done [#allocation4], 2048
    $region65: #{tpu_custom_call.1} parent=1 // pred_fallthru
      _
    %915 = vsyncpa [#allocation3], 1
    %916 = vsyncpa [#allocation6], 1
    %917 = vsyncpa [#allocation9], 1
    %918 = vsyncpa [#allocation12], 1
    %919 = vsyncpa [#allocation4], 1

</llo_original>
